<compile_context>
chip_gen: v7x
topology: tpu7x:2x2x1
jax: 0.10.0
libtpu: 0.0.40
codegen_flags: <defaults>
</compile_context>

<pallas_src>
import jax
import jax.numpy as jnp
from jax.experimental import pallas as pl
from jax.experimental.pallas import tpu as pltpu

_LANE = 128
_TARGET_BLOCK_BYTES = 4 << 20        # ~4 MiB per block buffer (per review)
_VMEM_LIMIT_BYTES = 32 << 20         # in+out double-buffered = ~16 MiB; 32 MiB
                                     # headroom is legal on v5e/v6e/v7x alike.
_MIN_PALLAS_BYTES = 256 * 1024       # below this, pallas dispatch overhead
                                     # dominates -> plain XLA relu instead.
_COL_CANDIDATES = (8192, 4096, 2048, 1024, 512, 256, 128)


def _sublane_multiple(dtype):
    """Packed-sublane row multiple: 8 for 32-bit, 16 for bf16/f16, 32 for int8/fp8."""
    itemsize = jnp.dtype(dtype).itemsize
    return max(8, 32 // max(itemsize, 1))


def _relu_kernel(x_ref, o_ref):
    # Elementwise ReLU on one VMEM tile (VPU op); scalar 0 avoids a zero tile.
    o_ref[...] = jnp.maximum(x_ref[...], 0)


def _relu_2d(x2d, rows_per_block, cols):
    """Run the streaming ReLU over a lane-dense 2D slab."""
    rows = x2d.shape[0]
    n = x2d.size
    itemsize = jnp.dtype(x2d.dtype).itemsize
    grid = (pl.cdiv(rows, rows_per_block),)
    return pl.pallas_call(
        _relu_kernel,
        out_shape=jax.ShapeDtypeStruct(x2d.shape, x2d.dtype),
        grid_spec=pltpu.PrefetchScalarGridSpec(
            num_scalar_prefetch=0,
            grid=grid,
            in_specs=[pl.BlockSpec((rows_per_block, cols), lambda i: (i, 0))],
            out_specs=pl.BlockSpec((rows_per_block, cols), lambda i: (i, 0)),
        ),
        # Output may reuse the input HBM buffer (matches torch relu_ usage);
        # XLA inserts a copy automatically when the caller does not donate x.
        input_output_aliases={0: 0},
        cost_estimate=pl.CostEstimate(
            flops=n, transcendentals=0, bytes_accessed=2 * n * itemsize
        ),
        compiler_params=pltpu.CompilerParams(
            dimension_semantics=("parallel",),
            vmem_limit_bytes=_VMEM_LIMIT_BYTES,
        ),
    )(x2d)


def qrelu_forward(x):
    """Pallas implementation of QReLU.forward with the default config (qi=False).

    Accepts NCHW (or any shape) input, returns relu(x) with the same
    shape/dtype.
    """
    orig_shape = x.shape
    n = x.size
    if n == 0:
        return x

    dtype = x.dtype
    itemsize = jnp.dtype(dtype).itemsize

    # Tiny activations: pallas_call dispatch + pipeline prologue dominate, and
    # letting XLA fuse the relu into the producer conv/BN is strictly better.
    if n * itemsize < _MIN_PALLAS_BYTES:
        return jnp.maximum(x, 0)

    # Widest lane-dense slab width that divides n exactly (free reshape, no pad).
    cols = None
    for cand in _COL_CANDIDATES:
        if n % cand == 0:
            cols = cand
            break

    if cols is None:
        # Ragged element count: a pad -> kernel -> slice round trip moves ~3x
        # the bytes of the kernel itself, so plain XLA relu wins here.
        return jnp.maximum(x, 0)

    sub = _sublane_multiple(dtype)
    x2d = x.reshape(n // cols, cols)
    rows = x2d.shape[0]

    # Dtype-aware block row count targeting ~_TARGET_BLOCK_BYTES per buffer,
    # rounded to the packed-sublane multiple.
    rows_per_block = max(
        sub, (_TARGET_BLOCK_BYTES // (cols * itemsize)) // sub * sub
    )
    if rows_per_block >= rows:
        if rows >= 2 * sub:
            # Split the slab so the grid has >= 2 steps: keeps both of v7x's
            # TensorCores busy on the "parallel" axis (no-op on v5e/v6e).
            rows_per_block = ((rows + 1) // 2 + sub - 1) // sub * sub
        else:
            # Slab is a single sublane group; one full-extent block.
            rows_per_block = rows

    out2d = _relu_2d(x2d, rows_per_block, cols)
    return out2d.reshape(orig_shape)


if __name__ == "__main__":
    key = jax.random.PRNGKey(0)
    k1, k2, k3 = jax.random.split(key, 3)

    # 1. Module-scale small activation (2,4,16,16): small-tensor bypass path.
    x_small = jax.random.normal(k1, (2, 4, 16, 16), dtype=jnp.float32)
    ref_small = jnp.maximum(x_small, 0.0)
    out_small = jax.block_until_ready(qrelu_forward(x_small))
    assert out_small.shape == x_small.shape and out_small.dtype == x_small.dtype
    assert bool(jnp.array_equal(out_small, ref_small)), "small-tensor path mismatch"

    # 2. Larger f32 activation: Pallas streaming path, grid split into >= 2 blocks.
    x_f32 = jax.random.normal(k2, (2, 64, 32, 32), dtype=jnp.float32)
    ref_f32 = jnp.maximum(x_f32, 0.0)
    out_f32 = jax.block_until_ready(qrelu_forward(x_f32))
    assert out_f32.shape == x_f32.shape and out_f32.dtype == x_f32.dtype
    assert bool(jnp.array_equal(out_f32, ref_f32)), "f32 pallas path mismatch"

    # 3. bf16 Pallas path (packed-sublane, 16-row alignment).
    x_bf16 = jax.random.normal(k3, (4, 64, 32, 32), dtype=jnp.float32).astype(
        jnp.bfloat16
    )
    ref_bf16 = jnp.maximum(x_bf16, jnp.zeros_like(x_bf16))
    out_bf16 = jax.block_until_ready(qrelu_forward(x_bf16))
    assert out_bf16.shape == x_bf16.shape and out_bf16.dtype == jnp.bfloat16
    assert bool(jnp.array_equal(out_bf16, ref_bf16)), "bf16 pallas path mismatch"

    # 4. Partial final grid block (rows not a multiple of rows_per_block):
    #    exercises Pallas' masking of the last block explicitly.
    x2d = jax.random.normal(k1, (24, 256), dtype=jnp.float32)
    ref2d = jnp.maximum(x2d, 0.0)
    out2d = jax.block_until_ready(_relu_2d(x2d, 16, 256))
    assert bool(jnp.array_equal(out2d, ref2d)), "partial-block masking mismatch"

    # 5. Ragged element count: jnp fallback (no pad/slice round trip).
    x_rag = jax.random.normal(k2, (2, 3, 7, 5), dtype=jnp.float32)
    out_rag = jax.block_until_ready(qrelu_forward(x_rag))
    assert out_rag.shape == x_rag.shape and out_rag.dtype == x_rag.dtype
    assert bool(jnp.array_equal(out_rag, jnp.maximum(x_rag, 0.0))), (
        "ragged path mismatch"
    )

    print("KERNEL_OK")
</pallas_src>

<mosaic_0001>
module attributes {stable_mosaic.version = 11 : i64} {
  func.func @_relu_kernel(%arg0: i32, %arg1: memref<8x8192xf32, #tpu.memory_space<vmem>>, %arg2: memref<8x8192xf32, #tpu.memory_space<vmem>>) attributes {dimension_semantics = [#tpu.dimension_semantics<parallel>], iteration_bounds = array<i64: 2>, scalar_prefetch = 0 : i64, scratch_operands = 0 : i64, tpu.core_type = #tpu.core_type<tc>, window_params = [{transform_indices = @transform_0, window_bounds = array<i64: 8, 8192>}, {transform_indices = @transform_1, window_bounds = array<i64: 8, 8192>}]} {
    %c0 = arith.constant 0 : index
    %c0_0 = arith.constant 0 : index
    %0 = vector.load %arg1[%c0, %c0_0] : memref<8x8192xf32, #tpu.memory_space<vmem>>, vector<8x8192xf32>
    %cst = arith.constant 0.000000e+00 : f32
    %1 = vector.broadcast %cst : f32 to vector<8x8192xf32>
    %2 = arith.maximumf %0, %1 : vector<8x8192xf32>
    %c0_1 = arith.constant 0 : index
    %c0_2 = arith.constant 0 : index
    %3 = vector.load %arg2[%c0_1, %c0_2] : memref<8x8192xf32, #tpu.memory_space<vmem>>, vector<8x8192xf32>
    tpu.vector_store %arg2[%c0_1, %c0_2], %2 {strides = array<i32>} : memref<8x8192xf32, #tpu.memory_space<vmem>>, vector<8x8192xf32>,
    return
  }
  func.func @transform_0(%arg0: i32) -> (i32, i32) {
    %c0_i32 = arith.constant 0 : i32
    %c0_i32_0 = arith.constant 0 : i32
    return %arg0, %c0_i32 : i32, i32
  }
  func.func @transform_1(%arg0: i32) -> (i32, i32) {
    %c0_i32 = arith.constant 0 : i32
    %c0_i32_0 = arith.constant 0 : i32
    return %arg0, %c0_i32 : i32, i32
  }
}

</mosaic_0001>

<llo_original>
// kernel: tpu_custom_call.1
$region0: #{tpu_custom_call.1}
  #allocation0 [shape = 'u32[]', space=smem, size = 0x4, offset = 0x4, fixed_abs, tag = 'smem constant byte address 0x4 - core index']
  #allocation1 [shape = 'u32[144,128]{1,0:T(1,128)}', space=vmem, size = 0x12000, scoped, tag = 'internal scratch']
  %s0 = inlined_call_operand.hbm [shape: f32[16,8192], index: 0, kind: input, shape index: {}, may-alias: {0,1}]
  %s1 = inlined_call_operand.hbm [shape: f32[16,8192], index: 1, kind: output, shape index: {}, may-alias: {0,1}]
  %s2 = sld [smem:[#allocation0]]
  $region41: #{tpu_custom_call.1} parent=0
    _
  %s4 = ssub.s32 1, %s2
  %s5 = scalar_select 0, %s4, %s2
  $region1: #{tpu_custom_call.1} parent=0
    #allocation2 [shape = 'u8[524288]{0}', space=vmem, size = 0x80000, scoped, tag = 'input window, operand 0']
    #allocation3 [shape = 's32[2]{0}', space=sflag, size = 0x8, scoped, tag = 'scoped memory for tpu_custom_call.1']
    #allocation4 [shape = 's32[2]{0}', space=sflag, size = 0x8, scoped, tag = 'scoped memory for tpu_custom_call.1']
    #allocation5 [shape = 'u8[524288]{0}', space=vmem, size = 0x80000, scoped, tag = 'output window, operand 0']
    %6 = vsyncpa [#allocation3], 0
    %s7 = scalar_lea.sflag [#allocation3], 1
    %8 = vsyncpa %s7, 0
    %9 = vsyncpa [#allocation4], 0
    %s10 = scalar_lea.sflag [#allocation4], 1
    %11 = vsyncpa %s10, 0
    loop: start=0, step=1, limit=4
    $region2: #{tpu_custom_call.1} parent=1 // loop_pre_header
      _
    $region3: #{tpu_custom_call.1} parent=1 // loop_header
      %s13 = sphi 0, %s17
      %p14 = scmp.ge.s32.totalorder %s13, 4
      %s23 = sphi 0, %s25
      %s26 = sphi 0, %s23
      %s27 = sphi 0, %s26
      %s43 = sphi 0, %s27
      %s49 = sphi 0, %s51
      %s52 = sphi 0, %s49
      %s53 = sphi 0, %s52
      %s69 = sphi 0, %s53
    $region4: #{tpu_custom_call.1} parent=1 // loop_header_branch
      %16 = sbr.rel (%p14) target = $region8
    $region5: #{tpu_custom_call.1} parent=1 // loop_body
      %s18 = ssub.s32 %s13, 1
      %s19 = ssub.s32 %s13, 2
      %s20 = sadd.s32 %s13, 1
      %s21 = ssub.s32 %s13, %s20
      %p22 = scmp.eq.s32.totalorder %s21, 0
      %s24 = sadd.s32 %s23, 1
      %s25 = scalar_select %p22, %s23, %s24
      %p28 = pneg %p22
      %p29 = scmp.eq.s32.totalorder %s13, 1
      %p30 = por %p28, %p29
      %p31 = scmp.ne.s32.totalorder %s23, %s26
      %p32 = scmp.eq.s32.totalorder %s13, 0
      %p33 = por %p31, %p32
      %p34 = scmp.ne.s32.totalorder %s23, %s26
      %p35 = scmp.eq.s32.totalorder %s18, 1
      %p36 = por %p34, %p35
      %p37 = scmp.ne.s32.totalorder %s26, %s27
      %p38 = scmp.eq.s32.totalorder %s18, 0
      %p39 = por %p37, %p38
      %p40 = scmp.ne.s32.totalorder %s26, %s27
      %p41 = scmp.eq.s32.totalorder %s19, 1
      %p42 = por %p40, %p41
      %p44 = scmp.ne.s32.totalorder %s27, %s43
      %p45 = scmp.eq.s32.totalorder %s19, 0
      %p46 = por %p44, %p45
      %s47 = ssub.s32 %s13, %s20
      %p48 = scmp.eq.s32.totalorder %s47, 0
      %s50 = sadd.s32 %s49, 1
      %s51 = scalar_select %p48, %s49, %s50
      %p54 = pneg %p48
      %p55 = scmp.eq.s32.totalorder %s13, 1
      %p56 = por %p54, %p55
      %p57 = scmp.ne.s32.totalorder %s49, %s52
      %p58 = scmp.eq.s32.totalorder %s13, 0
      %p59 = por %p57, %p58
      %p60 = scmp.ne.s32.totalorder %s49, %s52
      %p61 = scmp.eq.s32.totalorder %s18, 1
      %p62 = por %p60, %p61
      %p63 = scmp.ne.s32.totalorder %s52, %s53
      %p64 = scmp.eq.s32.totalorder %s18, 0
      %p65 = por %p63, %p64
      %p66 = scmp.ne.s32.totalorder %s52, %s53
      %p67 = scmp.eq.s32.totalorder %s19, 1
      %p68 = por %p66, %p67
      %p70 = scmp.ne.s32.totalorder %s53, %s69
      %p71 = scmp.eq.s32.totalorder %s19, 0
      %p72 = por %p70, %p71
      %p73 = scmp.le.s32.totalorder 1, %s13
      %p74 = scmp.lt.s32.totalorder %s13, 3
      %p75 = pnand %p73, %p74
      %p76 = pneg %p75
      // Predicated region
      $region9: #{tpu_custom_call.1} parent=5 // pred_check
        _
      $region10: #{tpu_custom_call.1} parent=5 // pred_check_branch
        %78 = sbr.rel (%p75) target = $region12
      $region11: #{tpu_custom_call.1} parent=5 // pred_region
        %s79 = ssub.s32 %s13, 1
      $region12: #{tpu_custom_call.1} parent=5 // pred_fallthru
        _
      %p80 = scmp.lt.s32.totalorder %s13, 2
      // Predicated region
      $region13: #{tpu_custom_call.1} parent=5 // pred_check
        %p81 = pneg %p80
      $region14: #{tpu_custom_call.1} parent=5 // pred_check_branch
        %83 = sbr.rel (%p81) target = $region16
      $region15: #{tpu_custom_call.1} parent=5 // pred_region
        // Predicated region
        $region17: #{tpu_custom_call.1} parent=15 // pred_check
          %p84 = pneg %p33
        $region18: #{tpu_custom_call.1} parent=15 // pred_check_branch
          %86 = sbr.rel (%p84) target = $region20
        $region19: #{tpu_custom_call.1} parent=15 // pred_region
          %s87 = sand.u32 %s23, 1
          %s88 = scalar_lea.sflag [#allocation3], %s87
          %s89 = sand.u32 %s23, 1
          %s90 = smul.addr %s89, 512
          %s91 = scalar_lea.vmem [#allocation2], %s90
          %s93 = ssub.s32 8192, 8192
          %94 = vsyncadd %s88, %s93
          %s95 = smul.addr %s13, 64
          %s96 = smul.addr %s95, 128
          %s97 = scalar_lea.hbm %s0, %s96
          %s99 = sshll.u32 %s91, 4
          %s100 = int_to_ptr.vmem [resolvable:$true] %s99
          %102 = dma.hbm_to_vmem [thread:$0]  %s97, 8192, %s100, %s88
        $region20: #{tpu_custom_call.1} parent=15 // pred_fallthru
          _
      $region16: #{tpu_custom_call.1} parent=5 // pred_fallthru
        _
      %p103 = scmp.le.s32.totalorder 1, %s13
      %p104 = scmp.lt.s32.totalorder %s13, 3
      %p105 = pnand %p103, %p104
      %p106 = pneg %p105
      // Predicated region
      $region21: #{tpu_custom_call.1} parent=5 // pred_check
        _
      $region22: #{tpu_custom_call.1} parent=5 // pred_check_branch
        %108 = sbr.rel (%p105) target = $region24
      $region23: #{tpu_custom_call.1} parent=5 // pred_region
        %s109 = ssub.s32 %s13, 1
        %s110 = sand.u32 %s26, 1
        %s111 = scalar_lea.sflag [#allocation3], %s110
        %s112 = sand.u32 %s26, 1
        %s113 = smul.addr %s112, 512
        %s114 = scalar_lea.vmem [#allocation2], %s113
        // Predicated region
        $region25: #{tpu_custom_call.1} parent=23 // pred_check
          %p115 = pneg %p39
        $region26: #{tpu_custom_call.1} parent=23 // pred_check_branch
          %117 = sbr.rel (%p115) target = $region28
        $region27: #{tpu_custom_call.1} parent=23 // pred_region
          %118 = dma.done %s111, 8192
        $region28: #{tpu_custom_call.1} parent=23 // pred_fallthru
          _
        %s119 = sand.u32 %s26, 1
        %s120 = scalar_lea.sflag [#allocation3], %s119
        %s121 = sand.u32 %s26, 1
        %s122 = smul.addr %s121, 512
        %s123 = scalar_lea.vmem [#allocation2], %s122
        %p124 = pneg %p39
        %p125 = pneg %p36
        %p126 = pneg %p65
        %p127 = pneg %p62
        %s128 = sand.u32 %s52, 1
        %s129 = scalar_lea.sflag [#allocation4], %s128
        %s130 = sand.u32 %s52, 1
        %s131 = smul.addr %s130, 512
        %s132 = scalar_lea.vmem [#allocation5], %s131
        %v133 = vld [vmem:[%s114] sm:$0xff]
        %v134 = vld [vmem:[%s114 + $0x8] sm:$0xff]
        %v135 = vld [vmem:[%s114 + $0x10] sm:$0xff]
        %v136 = vld [vmem:[%s114 + $0x18] sm:$0xff]
        %v137 = vld [vmem:[%s114 + $0x20] sm:$0xff]
        %v138 = vld [vmem:[%s114 + $0x28] sm:$0xff]
        %v139 = vld [vmem:[%s114 + $0x30] sm:$0xff]
        %v140 = vld [vmem:[%s114 + $0x38] sm:$0xff]
        %v141 = vld [vmem:[%s114 + $0x40] sm:$0xff]
        %v142 = vld [vmem:[%s114 + $0x48] sm:$0xff]
        %v143 = vld [vmem:[%s114 + $0x50] sm:$0xff]
        %v144 = vld [vmem:[%s114 + $0x58] sm:$0xff]
        %v145 = vld [vmem:[%s114 + $0x60] sm:$0xff]
        %v146 = vld [vmem:[%s114 + $0x68] sm:$0xff]
        %v147 = vld [vmem:[%s114 + $0x70] sm:$0xff]
        %v148 = vld [vmem:[%s114 + $0x78] sm:$0xff]
        %v149 = vld [vmem:[%s114 + $0x80] sm:$0xff]
        %v150 = vld [vmem:[%s114 + $0x88] sm:$0xff]
        %v151 = vld [vmem:[%s114 + $0x90] sm:$0xff]
        %v152 = vld [vmem:[%s114 + $0x98] sm:$0xff]
        %v153 = vld [vmem:[%s114 + $0xa0] sm:$0xff]
        %v154 = vld [vmem:[%s114 + $0xa8] sm:$0xff]
        %v155 = vld [vmem:[%s114 + $0xb0] sm:$0xff]
        %v156 = vld [vmem:[%s114 + $0xb8] sm:$0xff]
        %v157 = vld [vmem:[%s114 + $0xc0] sm:$0xff]
        %v158 = vld [vmem:[%s114 + $0xc8] sm:$0xff]
        %v159 = vld [vmem:[%s114 + $0xd0] sm:$0xff]
        %v160 = vld [vmem:[%s114 + $0xd8] sm:$0xff]
        %v161 = vld [vmem:[%s114 + $0xe0] sm:$0xff]
        %v162 = vld [vmem:[%s114 + $0xe8] sm:$0xff]
        %v163 = vld [vmem:[%s114 + $0xf0] sm:$0xff]
        %v164 = vld [vmem:[%s114 + $0xf8] sm:$0xff]
        %v165 = vld [vmem:[%s114 + $0x100] sm:$0xff]
        %v166 = vld [vmem:[%s114 + $0x108] sm:$0xff]
        %v167 = vld [vmem:[%s114 + $0x110] sm:$0xff]
        %v168 = vld [vmem:[%s114 + $0x118] sm:$0xff]
        %v169 = vld [vmem:[%s114 + $0x120] sm:$0xff]
        %v170 = vld [vmem:[%s114 + $0x128] sm:$0xff]
        %v171 = vld [vmem:[%s114 + $0x130] sm:$0xff]
        %v172 = vld [vmem:[%s114 + $0x138] sm:$0xff]
        %v173 = vld [vmem:[%s114 + $0x140] sm:$0xff]
        %v174 = vld [vmem:[%s114 + $0x148] sm:$0xff]
        %v175 = vld [vmem:[%s114 + $0x150] sm:$0xff]
        %v176 = vld [vmem:[%s114 + $0x158] sm:$0xff]
        %v177 = vld [vmem:[%s114 + $0x160] sm:$0xff]
        %v178 = vld [vmem:[%s114 + $0x168] sm:$0xff]
        %v179 = vld [vmem:[%s114 + $0x170] sm:$0xff]
        %v180 = vld [vmem:[%s114 + $0x178] sm:$0xff]
        %v181 = vld [vmem:[%s114 + $0x180] sm:$0xff]
        %v182 = vld [vmem:[%s114 + $0x188] sm:$0xff]
        %v183 = vld [vmem:[%s114 + $0x190] sm:$0xff]
        %v184 = vld [vmem:[%s114 + $0x198] sm:$0xff]
        %v185 = vld [vmem:[%s114 + $0x1a0] sm:$0xff]
        %v186 = vld [vmem:[%s114 + $0x1a8] sm:$0xff]
        %v187 = vld [vmem:[%s114 + $0x1b0] sm:$0xff]
        %v188 = vld [vmem:[%s114 + $0x1b8] sm:$0xff]
        %v189 = vld [vmem:[%s114 + $0x1c0] sm:$0xff]
        %v190 = vld [vmem:[%s114 + $0x1c8] sm:$0xff]
        %v191 = vld [vmem:[%s114 + $0x1d0] sm:$0xff]
        %v192 = vld [vmem:[%s114 + $0x1d8] sm:$0xff]
        %v193 = vld [vmem:[%s114 + $0x1e0] sm:$0xff]
        %v194 = vld [vmem:[%s114 + $0x1e8] sm:$0xff]
        %v195 = vld [vmem:[%s114 + $0x1f0] sm:$0xff]
        %v196 = vld [vmem:[%s114 + $0x1f8] sm:$0xff]
        %v197 = vmax.f32 %v133, 0.0
        %v198 = vmax.f32 %v134, 0.0
        %v199 = vmax.f32 %v135, 0.0
        %v200 = vmax.f32 %v136, 0.0
        %v201 = vmax.f32 %v137, 0.0
        %v202 = vmax.f32 %v138, 0.0
        %v203 = vmax.f32 %v139, 0.0
        %v204 = vmax.f32 %v140, 0.0
        %v205 = vmax.f32 %v141, 0.0
        %v206 = vmax.f32 %v142, 0.0
        %v207 = vmax.f32 %v143, 0.0
        %v208 = vmax.f32 %v144, 0.0
        %v209 = vmax.f32 %v145, 0.0
        %v210 = vmax.f32 %v146, 0.0
        %v211 = vmax.f32 %v147, 0.0
        %v212 = vmax.f32 %v148, 0.0
        %v213 = vmax.f32 %v149, 0.0
        %v214 = vmax.f32 %v150, 0.0
        %v215 = vmax.f32 %v151, 0.0
        %v216 = vmax.f32 %v152, 0.0
        %v217 = vmax.f32 %v153, 0.0
        %v218 = vmax.f32 %v154, 0.0
        %v219 = vmax.f32 %v155, 0.0
        %v220 = vmax.f32 %v156, 0.0
        %v221 = vmax.f32 %v157, 0.0
        %v222 = vmax.f32 %v158, 0.0
        %v223 = vmax.f32 %v159, 0.0
        %v224 = vmax.f32 %v160, 0.0
        %v225 = vmax.f32 %v161, 0.0
        %v226 = vmax.f32 %v162, 0.0
        %v227 = vmax.f32 %v163, 0.0
        %v228 = vmax.f32 %v164, 0.0
        %v229 = vmax.f32 %v165, 0.0
        %v230 = vmax.f32 %v166, 0.0
        %v231 = vmax.f32 %v167, 0.0
        %v232 = vmax.f32 %v168, 0.0
        %v233 = vmax.f32 %v169, 0.0
        %v234 = vmax.f32 %v170, 0.0
        %v235 = vmax.f32 %v171, 0.0
        %v236 = vmax.f32 %v172, 0.0
        %v237 = vmax.f32 %v173, 0.0
        %v238 = vmax.f32 %v174, 0.0
        %v239 = vmax.f32 %v175, 0.0
        %v240 = vmax.f32 %v176, 0.0
        %v241 = vmax.f32 %v177, 0.0
        %v242 = vmax.f32 %v178, 0.0
        %v243 = vmax.f32 %v179, 0.0
        %v244 = vmax.f32 %v180, 0.0
        %v245 = vmax.f32 %v181, 0.0
        %v246 = vmax.f32 %v182, 0.0
        %v247 = vmax.f32 %v183, 0.0
        %v248 = vmax.f32 %v184, 0.0
        %v249 = vmax.f32 %v185, 0.0
        %v250 = vmax.f32 %v186, 0.0
        %v251 = vmax.f32 %v187, 0.0
        %v252 = vmax.f32 %v188, 0.0
        %v253 = vmax.f32 %v189, 0.0
        %v254 = vmax.f32 %v190, 0.0
        %v255 = vmax.f32 %v191, 0.0
        %v256 = vmax.f32 %v192, 0.0
        %v257 = vmax.f32 %v193, 0.0
        %v258 = vmax.f32 %v194, 0.0
        %v259 = vmax.f32 %v195, 0.0
        %v260 = vmax.f32 %v196, 0.0
        %261 = vst [vmem:[%s132] sm:$0xff] %v197
        %262 = vst [vmem:[%s132 + $0x8] sm:$0xff] %v198
        %263 = vst [vmem:[%s132 + $0x10] sm:$0xff] %v199
        %264 = vst [vmem:[%s132 + $0x18] sm:$0xff] %v200
        %265 = vst [vmem:[%s132 + $0x20] sm:$0xff] %v201
        %266 = vst [vmem:[%s132 + $0x28] sm:$0xff] %v202
        %267 = vst [vmem:[%s132 + $0x30] sm:$0xff] %v203
        %268 = vst [vmem:[%s132 + $0x38] sm:$0xff] %v204
        %269 = vst [vmem:[%s132 + $0x40] sm:$0xff] %v205
        %270 = vst [vmem:[%s132 + $0x48] sm:$0xff] %v206
        %271 = vst [vmem:[%s132 + $0x50] sm:$0xff] %v207
        %272 = vst [vmem:[%s132 + $0x58] sm:$0xff] %v208
        %273 = vst [vmem:[%s132 + $0x60] sm:$0xff] %v209
        %274 = vst [vmem:[%s132 + $0x68] sm:$0xff] %v210
        %275 = vst [vmem:[%s132 + $0x70] sm:$0xff] %v211
        %276 = vst [vmem:[%s132 + $0x78] sm:$0xff] %v212
        %277 = vst [vmem:[%s132 + $0x80] sm:$0xff] %v213
        %278 = vst [vmem:[%s132 + $0x88] sm:$0xff] %v214
        %279 = vst [vmem:[%s132 + $0x90] sm:$0xff] %v215
        %280 = vst [vmem:[%s132 + $0x98] sm:$0xff] %v216
        %281 = vst [vmem:[%s132 + $0xa0] sm:$0xff] %v217
        %282 = vst [vmem:[%s132 + $0xa8] sm:$0xff] %v218
        %283 = vst [vmem:[%s132 + $0xb0] sm:$0xff] %v219
        %284 = vst [vmem:[%s132 + $0xb8] sm:$0xff] %v220
        %285 = vst [vmem:[%s132 + $0xc0] sm:$0xff] %v221
        %286 = vst [vmem:[%s132 + $0xc8] sm:$0xff] %v222
        %287 = vst [vmem:[%s132 + $0xd0] sm:$0xff] %v223
        %288 = vst [vmem:[%s132 + $0xd8] sm:$0xff] %v224
        %289 = vst [vmem:[%s132 + $0xe0] sm:$0xff] %v225
        %290 = vst [vmem:[%s132 + $0xe8] sm:$0xff] %v226
        %291 = vst [vmem:[%s132 + $0xf0] sm:$0xff] %v227
        %292 = vst [vmem:[%s132 + $0xf8] sm:$0xff] %v228
        %293 = vst [vmem:[%s132 + $0x100] sm:$0xff] %v229
        %294 = vst [vmem:[%s132 + $0x108] sm:$0xff] %v230
        %295 = vst [vmem:[%s132 + $0x110] sm:$0xff] %v231
        %296 = vst [vmem:[%s132 + $0x118] sm:$0xff] %v232
        %297 = vst [vmem:[%s132 + $0x120] sm:$0xff] %v233
        %298 = vst [vmem:[%s132 + $0x128] sm:$0xff] %v234
        %299 = vst [vmem:[%s132 + $0x130] sm:$0xff] %v235
        %300 = vst [vmem:[%s132 + $0x138] sm:$0xff] %v236
        %301 = vst [vmem:[%s132 + $0x140] sm:$0xff] %v237
        %302 = vst [vmem:[%s132 + $0x148] sm:$0xff] %v238
        %303 = vst [vmem:[%s132 + $0x150] sm:$0xff] %v239
        %304 = vst [vmem:[%s132 + $0x158] sm:$0xff] %v240
        %305 = vst [vmem:[%s132 + $0x160] sm:$0xff] %v241
        %306 = vst [vmem:[%s132 + $0x168] sm:$0xff] %v242
        %307 = vst [vmem:[%s132 + $0x170] sm:$0xff] %v243
        %308 = vst [vmem:[%s132 + $0x178] sm:$0xff] %v244
        %309 = vst [vmem:[%s132 + $0x180] sm:$0xff] %v245
        %310 = vst [vmem:[%s132 + $0x188] sm:$0xff] %v246
        %311 = vst [vmem:[%s132 + $0x190] sm:$0xff] %v247
        %312 = vst [vmem:[%s132 + $0x198] sm:$0xff] %v248
        %313 = vst [vmem:[%s132 + $0x1a0] sm:$0xff] %v249
        %314 = vst [vmem:[%s132 + $0x1a8] sm:$0xff] %v250
        %315 = vst [vmem:[%s132 + $0x1b0] sm:$0xff] %v251
        %316 = vst [vmem:[%s132 + $0x1b8] sm:$0xff] %v252
        %317 = vst [vmem:[%s132 + $0x1c0] sm:$0xff] %v253
        %318 = vst [vmem:[%s132 + $0x1c8] sm:$0xff] %v254
        %319 = vst [vmem:[%s132 + $0x1d0] sm:$0xff] %v255
        %320 = vst [vmem:[%s132 + $0x1d8] sm:$0xff] %v256
        %321 = vst [vmem:[%s132 + $0x1e0] sm:$0xff] %v257
        %322 = vst [vmem:[%s132 + $0x1e8] sm:$0xff] %v258
        %323 = vst [vmem:[%s132 + $0x1f0] sm:$0xff] %v259
        %324 = vst [vmem:[%s132 + $0x1f8] sm:$0xff] %v260
        %s325 = sand.u32 %s52, 1
        %s326 = scalar_lea.sflag [#allocation4], %s325
        %s327 = sand.u32 %s52, 1
        %s328 = smul.addr %s327, 512
        %s329 = scalar_lea.vmem [#allocation5], %s328
        // Predicated region
        $region29: #{tpu_custom_call.1} parent=23 // pred_check
          %p330 = pneg %p62
        $region30: #{tpu_custom_call.1} parent=23 // pred_check_branch
          %332 = sbr.rel (%p330) target = $region32
        $region31: #{tpu_custom_call.1} parent=23 // pred_region
          %s334 = ssub.s32 8192, 8192
          %335 = vsyncadd %s326, %s334
          %s336 = smul.addr %s18, 64
          %s337 = smul.addr %s336, 128
          %s338 = scalar_lea.hbm %s1, %s337
          %s340 = sshll.u32 %s329, 4
          %s341 = int_to_ptr.vmem [resolvable:$true] %s340
          %343 = dma.vmem_to_hbm [thread:$0]  %s341, 8192, %s338, %s326
        $region32: #{tpu_custom_call.1} parent=23 // pred_fallthru
          _
      $region24: #{tpu_custom_call.1} parent=5 // pred_fallthru
        _
      %p344 = scmp.le.s32.totalorder 2, %s13
      // Predicated region
      $region33: #{tpu_custom_call.1} parent=5 // pred_check
        %p345 = pneg %p344
      $region34: #{tpu_custom_call.1} parent=5 // pred_check_branch
        %347 = sbr.rel (%p345) target = $region36
      $region35: #{tpu_custom_call.1} parent=5 // pred_region
        %s348 = ssub.s32 %s13, 2
        // Predicated region
        $region37: #{tpu_custom_call.1} parent=35 // pred_check
          %p349 = pneg %p68
        $region38: #{tpu_custom_call.1} parent=35 // pred_check_branch
          %351 = sbr.rel (%p349) target = $region40
        $region39: #{tpu_custom_call.1} parent=35 // pred_region
          %s352 = sand.u32 %s53, 1
          %s353 = scalar_lea.sflag [#allocation4], %s352
          %s354 = sand.u32 %s53, 1
          %s355 = smul.addr %s354, 512
          %s356 = scalar_lea.vmem [#allocation5], %s355
          %357 = dma.done %s353, 8192
        $region40: #{tpu_custom_call.1} parent=35 // pred_fallthru
          _
      $region36: #{tpu_custom_call.1} parent=5 // pred_fallthru
        _
    $region6: #{tpu_custom_call.1} parent=1 // loop_footer
      %s17 = sadd.s32 1, %s13
    $region7: #{tpu_custom_call.1} parent=1 // loop_footer_branch
      %12 = sbr.rel target = $region3
    $region8: #{tpu_custom_call.1} parent=1 // loop_exit
      _
    %358 = vsyncpa [#allocation3], 1
    %s359 = scalar_lea.sflag [#allocation3], 1
    %360 = vsyncpa %s359, 1
    %361 = vsyncpa [#allocation4], 1
    %s362 = scalar_lea.sflag [#allocation4], 1
    %363 = vsyncpa %s362, 1

</llo_original>
